<compile_context>
chip_gen: v7x
topology: tpu7x:2x2x1
jax: 0.10.0
libtpu: 0.0.40
codegen_flags: <defaults>
</compile_context>

<pallas_src>
import functools

import jax
import jax.numpy as jnp
from jax import lax
from jax.experimental import pallas as pl
from jax.experimental.pallas import tpu as pltpu


def _round_up(x, m):
    return ((x + m - 1) // m) * m


# ----------------------------------------------------------------------------
# Fused kernel:  bf16 GEMM -> (folded BN + bias) scale/shift -> ReLU
# ----------------------------------------------------------------------------
def _linear_bn_relu_kernel(x_ref, w_ref, sv_ref, o_ref):
    # [tb, f_in] @ [f_in, tn] on the MXU, f32 accumulation.
    y = jnp.dot(x_ref[...], w_ref[...], preferred_element_type=jnp.float32)
    scale = sv_ref[0:1, :]          # gamma * rsqrt(var + eps)          [1, tn]
    shift = sv_ref[1:2, :]          # (bias - mean) * scale + beta      [1, tn]
    # Dropout is identity in eval mode.
    o_ref[...] = jnp.maximum(y * scale + shift, 0.0).astype(o_ref.dtype)


# ----------------------------------------------------------------------------
# One-time parameter prep (per weight update), NOT on the per-forward path:
#   - W^T, lane-padded to a 128 multiple, cast to bf16
#   - BatchNorm (inference) + linear bias folded into scale/shift rows
# ----------------------------------------------------------------------------
def prepare_params(w, b, gamma, beta, running_mean, running_var, *, eps=1e-5):
    f_out, f_in = w.shape
    f_pad = _round_up(max(f_out, 128), 128)
    pad_f = f_pad - f_out

    w_t = jnp.pad(jnp.asarray(w, jnp.float32).T,
                  ((0, 0), (0, pad_f))).astype(jnp.bfloat16)            # [f_in, f_pad]

    scale = gamma * lax.rsqrt(running_var.astype(jnp.float32) + eps)     # [f_out]
    shift = (b - running_mean) * scale + beta                            # [f_out]
    sv = jnp.stack([jnp.pad(scale, (0, pad_f)),
                    jnp.pad(shift, (0, pad_f))], axis=0).astype(jnp.float32)  # [2, f_pad]
    return w_t, sv, int(f_out)


# ----------------------------------------------------------------------------
# Forward wrapper: batch x output-feature tiled grid, bf16 operands
# ----------------------------------------------------------------------------
@functools.partial(jax.jit, static_argnames=("f_out",))
def base_linear_layer_forward(x, w_t, sv, *, f_out):
    B, f_in = x.shape
    f_pad = w_t.shape[1]

    # Output-feature tile: largest of {512, 256, 128} that divides f_pad.
    if f_pad % 512 == 0:
        tn = 512
    elif f_pad % 256 == 0:
        tn = 256
    else:
        tn = 128

    # Row tile: big at scale (amortize per-step overhead), but >= 2 row tiles
    # at small batch so both v7x TensorCores get work.
    if B >= 512:
        tb = 256
    elif B >= 16:
        tb = min(128, _round_up((B + 1) // 2, 16))
    else:
        tb = _round_up(max(B, 8), 8)
    b_rows = _round_up(B, tb)

    # Pad rows and cast to bf16 in one fused XLA op (pad forces a copy anyway).
    x_p = jnp.pad(x, ((0, b_rows - B), (0, 0))).astype(jnp.bfloat16)

    grid = (b_rows // tb, f_pad // tn)

    # Double-buffered working set (+ scale/shift rows padded to 8 sublanes).
    vmem_bytes = (2 * tb * f_in * 2        # x tiles (bf16)
                  + 2 * f_in * tn * 2      # W tiles (bf16)
                  + 2 * tb * tn * 4        # output tiles (f32)
                  + 2 * 8 * tn * 4)        # scale/shift slab
    vmem_limit = int(min(100 * (1 << 20), max(2 * vmem_bytes, 4 * (1 << 20))))

    flops = 2 * b_rows * f_in * f_pad + 3 * b_rows * f_pad
    bytes_accessed = (x_p.size * 2 + w_t.size * 2 + sv.size * 4
                      + b_rows * f_pad * 4)

    out = pl.pallas_call(
        _linear_bn_relu_kernel,
        out_shape=jax.ShapeDtypeStruct((b_rows, f_pad), jnp.float32),
        grid_spec=pltpu.PrefetchScalarGridSpec(
            num_scalar_prefetch=0,
            grid=grid,
            in_specs=[
                pl.BlockSpec((tb, f_in), lambda i, j: (i, 0)),   # x row tile
                pl.BlockSpec((f_in, tn), lambda i, j: (0, j)),   # W column tile
                pl.BlockSpec((2, tn), lambda i, j: (0, j)),      # scale/shift slab
            ],
            out_specs=pl.BlockSpec((tb, tn), lambda i, j: (i, j)),
        ),
        compiler_params=pltpu.CompilerParams(
            dimension_semantics=("parallel", "parallel"),
            vmem_limit_bytes=vmem_limit,
        ),
        cost_estimate=pl.CostEstimate(
            flops=flops, transcendentals=0, bytes_accessed=bytes_accessed),
    )(x_p, w_t, sv)

    # Slice away row / lane padding.
    return out[:B, :f_out]


# ----------------------------------------------------------------------------
# Pure-JAX reference for correctness (f32 everywhere)
# ----------------------------------------------------------------------------
def reference_forward(x, w, b, gamma, beta, running_mean, running_var, eps=1e-5):
    y = x @ w.T + b
    y = (y - running_mean) / jnp.sqrt(running_var + eps) * gamma + beta
    y = jnp.maximum(y, 0.0)
    return y  # Dropout = identity in eval


if __name__ == "__main__":
    # Small config consistent with BaseLinearLayer(num_in=32, num_out=32, dropout=0.5)
    B, NUM_IN, NUM_OUT = 64, 32, 32

    key = jax.random.PRNGKey(0)
    kx, kw, kb, kg, kbt, km, kv = jax.random.split(key, 7)

    x = jax.random.normal(kx, (B, NUM_IN), jnp.float32)

    # nn.Linear default init: U(-1/sqrt(num_in), 1/sqrt(num_in))
    lim = 1.0 / float(NUM_IN) ** 0.5
    w = jax.random.uniform(kw, (NUM_OUT, NUM_IN), jnp.float32, -lim, lim)
    b = jax.random.uniform(kb, (NUM_OUT,), jnp.float32, -lim, lim)

    # BatchNorm1d affine params + (nontrivial) running statistics.
    gamma = jax.random.uniform(kg, (NUM_OUT,), jnp.float32, 0.5, 1.5)
    beta = 0.1 * jax.random.normal(kbt, (NUM_OUT,), jnp.float32)
    running_mean = 0.1 * jax.random.normal(km, (NUM_OUT,), jnp.float32)
    running_var = jax.random.uniform(kv, (NUM_OUT,), jnp.float32, 0.5, 1.5)

    # One-time param prep (transpose/pad/bf16-cast W, fold BN+bias).
    w_t, sv, f_out = prepare_params(w, b, gamma, beta, running_mean, running_var)
    w_t, sv = jax.block_until_ready((w_t, sv))

    out = base_linear_layer_forward(x, w_t, sv, f_out=f_out)
    out = jax.block_until_ready(out)

    ref = reference_forward(x, w, b, gamma, beta, running_mean, running_var)
    assert out.shape == (B, NUM_OUT)
    # bf16 MXU operands -> loosened tolerance vs the f32 reference.
    assert jnp.allclose(out, ref, atol=5e-2, rtol=5e-2), "mismatch vs reference"

    # TODO(synk): training-mode BatchNorm (batch statistics + running-stat update)
    # and training-mode Dropout (random mask) are not implemented; eval semantics used.
    print("KERNEL_OK")
</pallas_src>

<mosaic_0001>
module attributes {stable_mosaic.version = 11 : i64} {
  func.func @_linear_bn_relu_kernel(%arg0: i32, %arg1: i32, %arg2: memref<32x32xbf16, #tpu.memory_space<vmem>>, %arg3: memref<32x128xbf16, #tpu.memory_space<vmem>>, %arg4: memref<2x128xf32, #tpu.memory_space<vmem>>, %arg5: memref<32x128xf32, #tpu.memory_space<vmem>>) attributes {dimension_semantics = [#tpu.dimension_semantics<parallel>, #tpu.dimension_semantics<parallel>], iteration_bounds = array<i64: 2, 1>, scalar_prefetch = 0 : i64, scratch_operands = 0 : i64, tpu.core_type = #tpu.core_type<tc>, window_params = [{transform_indices = @transform_0, window_bounds = array<i64: 32, 32>}, {transform_indices = @transform_1, window_bounds = array<i64: 32, 128>}, {transform_indices = @transform_2, window_bounds = array<i64: 2, 128>}, {transform_indices = @transform_3, window_bounds = array<i64: 32, 128>}]} {
    %c0 = arith.constant 0 : index
    %c0_0 = arith.constant 0 : index
    %0 = vector.load %arg2[%c0, %c0_0] : memref<32x32xbf16, #tpu.memory_space<vmem>>, vector<32x32xbf16>
    %c0_1 = arith.constant 0 : index
    %c0_2 = arith.constant 0 : index
    %1 = vector.load %arg3[%c0_1, %c0_2] : memref<32x128xbf16, #tpu.memory_space<vmem>>, vector<32x128xbf16>
    %cst = arith.constant dense<0.000000e+00> : vector<32x128xf32>
    %2 = tpu.matmul %0, %1, %cst {dimension_numbers = #tpu.dot_dimension_numbers<[1], [0], [0], [1], [0, 0, 1, 1], [], []>} : vector<32x32xbf16>, vector<32x128xbf16>, vector<32x128xf32> -> vector<32x128xf32>
    %c0_3 = arith.constant 0 : index
    %c0_4 = arith.constant 0 : index
    %3 = vector.load %arg4[%c0_3, %c0_4] : memref<2x128xf32, #tpu.memory_space<vmem>>, vector<1x128xf32>
    %c1 = arith.constant 1 : index
    %c0_5 = arith.constant 0 : index
    %4 = vector.load %arg4[%c1, %c0_5] : memref<2x128xf32, #tpu.memory_space<vmem>>, vector<1x128xf32>
    %5 = vector.broadcast %3 : vector<1x128xf32> to vector<32x128xf32>
    %6 = arith.mulf %2, %5 : vector<32x128xf32>
    %7 = vector.broadcast %4 : vector<1x128xf32> to vector<32x128xf32>
    %8 = arith.addf %6, %7 : vector<32x128xf32>
    %cst_6 = arith.constant 0.000000e+00 : f32
    %9 = vector.broadcast %cst_6 : f32 to vector<32x128xf32>
    %10 = arith.maximumf %8, %9 : vector<32x128xf32>
    %c0_7 = arith.constant 0 : index
    %c0_8 = arith.constant 0 : index
    %11 = vector.load %arg5[%c0_7, %c0_8] : memref<32x128xf32, #tpu.memory_space<vmem>>, vector<32x128xf32>
    tpu.vector_store %arg5[%c0_7, %c0_8], %10 {strides = array<i32>} : memref<32x128xf32, #tpu.memory_space<vmem>>, vector<32x128xf32>,
    return
  }
  func.func @transform_0(%arg0: i32, %arg1: i32) -> (i32, i32) {
    %c0_i32 = arith.constant 0 : i32
    %c0_i32_0 = arith.constant 0 : i32
    return %arg0, %c0_i32 : i32, i32
  }
  func.func @transform_1(%arg0: i32, %arg1: i32) -> (i32, i32) {
    %c0_i32 = arith.constant 0 : i32
    %c0_i32_0 = arith.constant 0 : i32
    return %c0_i32, %arg1 : i32, i32
  }
  func.func @transform_2(%arg0: i32, %arg1: i32) -> (i32, i32) {
    %c0_i32 = arith.constant 0 : i32
    %c0_i32_0 = arith.constant 0 : i32
    return %c0_i32, %arg1 : i32, i32
  }
  func.func @transform_3(%arg0: i32, %arg1: i32) -> (i32, i32) {
    %c0_i32 = arith.constant 0 : i32
    return %arg0, %arg1 : i32, i32
  }
}

</mosaic_0001>

<llo_original>
// kernel: base_linear_layer_forward.1
$region0: #{base_linear_layer_forward.1}
  #allocation0 [shape = 'u32[]', space=smem, size = 0x4, offset = 0x4, fixed_abs, tag = 'smem constant byte address 0x4 - core index']
  #allocation1 [shape = 'u32[144,128]{1,0:T(1,128)}', space=vmem, size = 0x12000, scoped, tag = 'internal scratch']
  %s0 = inlined_call_operand.vmem [shape: bf16[64,32], index: 0, kind: input, shape index: {}]
  %s1 = inlined_call_operand.vmem [shape: bf16[32,128], index: 1, kind: input, shape index: {}]
  %s2 = inlined_call_operand.vmem [shape: f32[2,128], index: 2, kind: input, shape index: {}]
  %s3 = inlined_call_operand.vmem [shape: f32[64,128], index: 3, kind: output, shape index: {}]
  %s4 = sld [smem:[#allocation0]]
  $region45: #{base_linear_layer_forward.1} parent=0
    _
  %s6 = ssub.s32 1, %s4
  %s7 = scalar_select 0, %s6, %s4
  loop: start=0, step=1, limit=4
  $region2: #{base_linear_layer_forward.1} parent=0 // loop_pre_header
    _
  $region3: #{base_linear_layer_forward.1} parent=0 // loop_header
    %s9 = sphi 0, %s13
    %p10 = scmp.ge.s32.totalorder %s9, 4
    %s16 = sphi 0, %s28
    %s17 = sphi 0, %s24
    %s18 = sphi 0, %s16
    %s19 = sphi 0, %s17
    %s20 = sphi 0, %s18
    %s21 = sphi 0, %s19
    %s31 = sphi 0, %s33
    %s34 = sphi 0, %s31
    %s35 = sphi 0, %s34
    %s51 = sphi 0, %s35
    %s57 = sphi 0, %s59
    %s60 = sphi 0, %s57
    %s61 = sphi 0, %s60
    %s77 = sphi 0, %s61
    %s83 = sphi 0, %s85
    %s86 = sphi 0, %s83
    %s87 = sphi 0, %s86
    %s103 = sphi 0, %s87
    %s111 = sphi 0, %s113
    %s114 = sphi 0, %s111
    %s115 = sphi 0, %s114
    %s131 = sphi 0, %s115
  $region4: #{base_linear_layer_forward.1} parent=0 // loop_header_branch
    %12 = sbr.rel (%p10) target = $region8
  $region5: #{base_linear_layer_forward.1} parent=0 // loop_body
    %s14 = ssub.s32 %s9, 1
    %s15 = ssub.s32 %s9, 2
    %s22 = sadd.s32 1, %s17
    %p23 = scmp.ge.s32.totalorder %s22, 1
    %s24 = scalar_select %p23, 0, %s22
    %s25 = sadd.s32 1, %s16
    %s26 = scalar_select %p23, %s25, %s16
    %p27 = scmp.ge.s32.totalorder %s26, 2
    %s28 = scalar_select %p27, 0, %s26
    %s29 = ssub.s32 %s16, %s28
    %p30 = scmp.eq.s32.totalorder %s29, 0
    %s32 = sadd.s32 %s31, 1
    %s33 = scalar_select %p30, %s31, %s32
    %p36 = pneg %p30
    %p37 = scmp.eq.s32.totalorder %s9, 1
    %p38 = por %p36, %p37
    %p39 = scmp.ne.s32.totalorder %s31, %s34
    %p40 = scmp.eq.s32.totalorder %s9, 0
    %p41 = por %p39, %p40
    %p42 = scmp.ne.s32.totalorder %s31, %s34
    %p43 = scmp.eq.s32.totalorder %s14, 1
    %p44 = por %p42, %p43
    %p45 = scmp.ne.s32.totalorder %s34, %s35
    %p46 = scmp.eq.s32.totalorder %s14, 0
    %p47 = por %p45, %p46
    %p48 = scmp.ne.s32.totalorder %s34, %s35
    %p49 = scmp.eq.s32.totalorder %s15, 1
    %p50 = por %p48, %p49
    %p52 = scmp.ne.s32.totalorder %s35, %s51
    %p53 = scmp.eq.s32.totalorder %s15, 0
    %p54 = por %p52, %p53
    %s55 = ssub.s32 %s17, %s24
    %p56 = scmp.eq.s32.totalorder %s55, 0
    %s58 = sadd.s32 %s57, 1
    %s59 = scalar_select %p56, %s57, %s58
    %p62 = pneg %p56
    %p63 = scmp.eq.s32.totalorder %s9, 1
    %p64 = por %p62, %p63
    %p65 = scmp.ne.s32.totalorder %s57, %s60
    %p66 = scmp.eq.s32.totalorder %s9, 0
    %p67 = por %p65, %p66
    %p68 = scmp.ne.s32.totalorder %s57, %s60
    %p69 = scmp.eq.s32.totalorder %s14, 1
    %p70 = por %p68, %p69
    %p71 = scmp.ne.s32.totalorder %s60, %s61
    %p72 = scmp.eq.s32.totalorder %s14, 0
    %p73 = por %p71, %p72
    %p74 = scmp.ne.s32.totalorder %s60, %s61
    %p75 = scmp.eq.s32.totalorder %s15, 1
    %p76 = por %p74, %p75
    %p78 = scmp.ne.s32.totalorder %s61, %s77
    %p79 = scmp.eq.s32.totalorder %s15, 0
    %p80 = por %p78, %p79
    %s81 = ssub.s32 %s17, %s24
    %p82 = scmp.eq.s32.totalorder %s81, 0
    %s84 = sadd.s32 %s83, 1
    %s85 = scalar_select %p82, %s83, %s84
    %p88 = pneg %p82
    %p89 = scmp.eq.s32.totalorder %s9, 1
    %p90 = por %p88, %p89
    %p91 = scmp.ne.s32.totalorder %s83, %s86
    %p92 = scmp.eq.s32.totalorder %s9, 0
    %p93 = por %p91, %p92
    %p94 = scmp.ne.s32.totalorder %s83, %s86
    %p95 = scmp.eq.s32.totalorder %s14, 1
    %p96 = por %p94, %p95
    %p97 = scmp.ne.s32.totalorder %s86, %s87
    %p98 = scmp.eq.s32.totalorder %s14, 0
    %p99 = por %p97, %p98
    %p100 = scmp.ne.s32.totalorder %s86, %s87
    %p101 = scmp.eq.s32.totalorder %s15, 1
    %p102 = por %p100, %p101
    %p104 = scmp.ne.s32.totalorder %s87, %s103
    %p105 = scmp.eq.s32.totalorder %s15, 0
    %p106 = por %p104, %p105
    %s107 = ssub.s32 %s16, %s28
    %s108 = ssub.s32 %s17, %s24
    %s109 = sor.u32 %s107, %s108
    %p110 = scmp.eq.s32.totalorder %s109, 0
    %s112 = sadd.s32 %s111, 1
    %s113 = scalar_select %p110, %s111, %s112
    %p116 = pneg %p110
    %p117 = scmp.eq.s32.totalorder %s9, 1
    %p118 = por %p116, %p117
    %p119 = scmp.ne.s32.totalorder %s111, %s114
    %p120 = scmp.eq.s32.totalorder %s9, 0
    %p121 = por %p119, %p120
    %p122 = scmp.ne.s32.totalorder %s111, %s114
    %p123 = scmp.eq.s32.totalorder %s14, 1
    %p124 = por %p122, %p123
    %p125 = scmp.ne.s32.totalorder %s114, %s115
    %p126 = scmp.eq.s32.totalorder %s14, 0
    %p127 = por %p125, %p126
    %p128 = scmp.ne.s32.totalorder %s114, %s115
    %p129 = scmp.eq.s32.totalorder %s15, 1
    %p130 = por %p128, %p129
    %p132 = scmp.ne.s32.totalorder %s115, %s131
    %p133 = scmp.eq.s32.totalorder %s15, 0
    %p134 = por %p132, %p133
    %p135 = scmp.le.s32.totalorder 1, %s9
    %p136 = scmp.lt.s32.totalorder %s9, 3
    %p137 = pnand %p135, %p136
    %p138 = pneg %p137
    // Predicated region
    $region9: #{base_linear_layer_forward.1} parent=5 // pred_check
      _
    $region10: #{base_linear_layer_forward.1} parent=5 // pred_check_branch
      %140 = sbr.rel (%p137) target = $region12
    $region11: #{base_linear_layer_forward.1} parent=5 // pred_region
      %s141 = ssub.s32 %s9, 1
      // Predicated region
      $region13: #{base_linear_layer_forward.1} parent=11 // pred_check
        %p142 = pneg %p73
      $region14: #{base_linear_layer_forward.1} parent=11 // pred_check_branch
        %144 = sbr.rel (%p142) target = $region16
      $region15: #{base_linear_layer_forward.1} parent=11 // pred_region
        %p145 = scmp.lt.s32.totalorder %s19, 0
        %s146 = scalar_select %p145, %s19, 0
        %s147 = smul.addr %s146, 4
        %s148 = scalar_lea.vmem %s1, %s147
      $region16: #{base_linear_layer_forward.1} parent=11 // pred_fallthru
        _
      // Predicated region
      $region17: #{base_linear_layer_forward.1} parent=11 // pred_check
        %p149 = pneg %p99
      $region18: #{base_linear_layer_forward.1} parent=11 // pred_check_branch
        %151 = sbr.rel (%p149) target = $region20
      $region19: #{base_linear_layer_forward.1} parent=11 // pred_region
        %p152 = scmp.lt.s32.totalorder %s19, 0
        %s153 = scalar_select %p152, %s19, 0
        %s154 = smul.addr %s153, 2
        %s155 = scalar_lea.vmem %s2, %s154
      $region20: #{base_linear_layer_forward.1} parent=11 // pred_fallthru
        _
    $region12: #{base_linear_layer_forward.1} parent=5 // pred_fallthru
      _
    %p156 = scmp.lt.s32.totalorder %s9, 2
    // Predicated region
    $region21: #{base_linear_layer_forward.1} parent=5 // pred_check
      %p157 = pneg %p156
    $region22: #{base_linear_layer_forward.1} parent=5 // pred_check_branch
      %159 = sbr.rel (%p157) target = $region24
    $region23: #{base_linear_layer_forward.1} parent=5 // pred_region
      // Predicated region
      $region25: #{base_linear_layer_forward.1} parent=23 // pred_check
        %p160 = pneg %p41
      $region26: #{base_linear_layer_forward.1} parent=23 // pred_check_branch
        %162 = sbr.rel (%p160) target = $region28
      $region27: #{base_linear_layer_forward.1} parent=23 // pred_region
        %s163 = smul.u32 4, %s16
        %p164 = scmp.lt.s32.totalorder %s163, 7
        %s165 = scalar_select %p164, %s163, 7
        %s166 = smul.addr %s165, 4
        %s167 = scalar_lea.vmem %s0, %s166
        %s168 = smul.u32 4, %s16
      $region28: #{base_linear_layer_forward.1} parent=23 // pred_fallthru
        _
    $region24: #{base_linear_layer_forward.1} parent=5 // pred_fallthru
      _
    %p169 = scmp.le.s32.totalorder 1, %s9
    %p170 = scmp.lt.s32.totalorder %s9, 3
    %p171 = pnand %p169, %p170
    %p172 = pneg %p171
    // Predicated region
    $region29: #{base_linear_layer_forward.1} parent=5 // pred_check
      _
    $region30: #{base_linear_layer_forward.1} parent=5 // pred_check_branch
      %174 = sbr.rel (%p171) target = $region32
    $region31: #{base_linear_layer_forward.1} parent=5 // pred_region
      %s175 = ssub.s32 %s9, 1
      %s176 = smul.u32 4, %s18
      %p177 = scmp.lt.s32.totalorder %s176, 7
      %s178 = scalar_select %p177, %s176, 7
      %s179 = smul.addr %s178, 4
      %s180 = scalar_lea.vmem %s0, %s179
      %p181 = pneg %p47
      %p182 = pneg %p44
      %p183 = scmp.lt.s32.totalorder %s19, 0
      %s184 = scalar_select %p183, %s19, 0
      %s185 = smul.addr %s184, 4
      %s186 = scalar_lea.vmem %s1, %s185
      %p187 = pneg %p73
      %p188 = pneg %p70
      %p189 = scmp.lt.s32.totalorder %s19, 0
      %s190 = scalar_select %p189, %s19, 0
      %s191 = smul.addr %s190, 2
      %s192 = scalar_lea.vmem %s2, %s191
      %p193 = pneg %p99
      %p194 = pneg %p96
      %p195 = pneg %p127
      %p196 = pneg %p124
      %s197 = smul.u32 4, %s18
      %p198 = scmp.lt.s32.totalorder %s197, 7
      %s199 = scalar_select %p198, %s197, 7
      %p200 = scmp.lt.s32.totalorder %s19, 0
      %s201 = scalar_select %p200, %s19, 0
      %s202 = sadd.s32 %s201, %s199
      %s203 = smul.addr %s202, 8
      %s204 = scalar_lea.vmem %s3, %s203
      %s205 = smul.u32 4, %s18
      %p206 = scmp.lt.s32.totalorder %s205, 7
      %s207 = scalar_select %p206, %s205, 7
      %s208 = smul.addr %s207, 4
      %s209 = scalar_lea.vmem %s0, %s208
      %s210 = smul.u32 4, %s18
      %p211 = scmp.lt.s32.totalorder %s19, 0
      %s212 = scalar_select %p211, %s19, 0
      %s213 = smul.addr %s212, 4
      %s214 = scalar_lea.vmem %s1, %s213
      %p215 = scmp.lt.s32.totalorder %s19, 0
      %s216 = scalar_select %p215, %s19, 0
      %s217 = smul.addr %s216, 2
      %s218 = scalar_lea.vmem %s2, %s217
      %s219 = smul.u32 4, %s18
      %p220 = scmp.lt.s32.totalorder %s219, 7
      %s221 = scalar_select %p220, %s219, 7
      %p222 = scmp.lt.s32.totalorder %s19, 0
      %s223 = scalar_select %p222, %s19, 0
      %s224 = sadd.s32 %s223, %s221
      %s225 = smul.addr %s224, 8
      %s226 = scalar_lea.vmem %s3, %s225
      %s227 = smul.u32 4, %s18
      %v229 = vld [vmem:[%s209] sm:$0xf]
      %v230 = vld [vmem:[%s209 + $0x4] sm:$0xf]
      %v231 = vld [vmem:[%s209 + $0x8] sm:$0xf]
      %v232 = vld [vmem:[%s209 + $0xc] sm:$0xf]
      %v233 = vld [vmem:[%s214] sm:$0xf]
      %v234 = vld [vmem:[%s214 + $0x4] sm:$0xf]
      %v235 = vld [vmem:[%s214 + $0x8] sm:$0xf]
      %v236 = vld [vmem:[%s214 + $0xc] sm:$0xf]
      %v241 = vunpack.c.l.b16 %v229
      %v242 = vunpack.c.l.b16 %v230
      %v243 = vunpack.c.l.b16 %v231
      %v244 = vunpack.c.l.b16 %v232
      %v245 = vpack.c.b16 %v242, %v241
      %v246 = vpack.c.b16 %v244, %v243
      %v251 = vunpack.c.l.b16 %v233
      %v252 = vunpack.c.l.b16 %v234
      %v253 = vunpack.c.l.b16 %v235
      %v254 = vunpack.c.l.b16 %v236
      %v255 = vpack.c.b16 %v252, %v251
      %v256 = vpack.c.b16 %v254, %v253
      %vm259 = vcmask 261120
      %v261 = vsel %vm259, %v245, 0
      %v264 = vsel %vm259, %v246, 0
      %266 = vmatprep.subr.bf16.mxu0 0
      %267 = vmatpush1.bf16.msra.mxu0 %v255
      %268 = vmatprep.subr.bf16.mxu0 0
      %269 = vmatpush1.bf16.msra.mxu0 %v256
      %270 = vmatprep.subr.bf16.mxu0 0
      %271 = vmatpush1.bf16.msra.mxu0 0
      %272 = vmatprep.subr.bf16.mxu0 0
      %273 = vmatpush1.bf16.msra.mxu0 0
      %274 = vmatprep.subr.bf16.mxu0 0
      %275 = vmatpush1.bf16.msra.mxu0 0
      %276 = vmatprep.subr.bf16.mxu0 0
      %277 = vmatpush1.bf16.msra.mxu0 0
      %278 = vmatprep.subr.bf16.mxu0 0
      %279 = vmatpush1.bf16.msra.mxu0 0
      %280 = vmatprep.subr.bf16.mxu0 0
      %281 = vmatpush1.bf16.msra.mxu0 0
      %282 = vmatprep.subr.bf16.mxu0 0
      %283 = vmatpush1.bf16.msra.mxu0 0
      %284 = vmatprep.subr.bf16.mxu0 0
      %285 = vmatpush1.bf16.msra.mxu0 0
      %286 = vmatprep.subr.bf16.mxu0 0
      %287 = vmatpush1.bf16.msra.mxu0 0
      %288 = vmatprep.subr.bf16.mxu0 0
      %289 = vmatpush1.bf16.msra.mxu0 0
      %290 = vmatprep.subr.bf16.mxu0 0
      %291 = vmatpush1.bf16.msra.mxu0 0
      %292 = vmatprep.subr.bf16.mxu0 0
      %293 = vmatpush1.bf16.msra.mxu0 0
      %294 = vmatprep.subr.bf16.mxu0 0
      %295 = vmatpush1.bf16.msra.mxu0 0
      %296 = vmatprep.subr.bf16.mxu0 0
      %297 = vmatpush1.bf16.msra.mxu0 0
      %298 = vmatprep.mubr.bf16.mxu0 0
      %299 = vmatmul.mubr.bf16.gmra.mrb[0].mxu0 %v261
      %v300 = vpop.f32.mrb[0].mxu0
      %v301 = vadd.f32 0.0, %v300
      %v302 = vpop.f32.mrb[0].mxu0
      %v303 = vpop.f32.mrb[0].mxu0
      %v304 = vadd.f32 0.0, %v303
      %v305 = vpop.f32.mrb[0].mxu0
      %306 = vmatprep.mubr.bf16.mxu0 0
      %307 = vmatmul.mubr.bf16.gmra.mrb[0].mxu0 %v264
      %v308 = vpop.f32.mrb[0].mxu0
      %v309 = vadd.f32 0.0, %v308
      %v310 = vpop.f32.mrb[0].mxu0
      %v311 = vpop.f32.mrb[0].mxu0
      %v312 = vadd.f32 0.0, %v311
      %v313 = vpop.f32.mrb[0].mxu0
      %314 = vdwg.mxu0
      %v315 = vld [vmem:[%s218] sm:$0x1]
      %v316 = vld [vmem:[%s218 + $0x1] sm:$0x1]
      %v317 = vlaneseq
      %v318 = vshrl.u32 %v317, 7
      %v319 = vsub.s32 0, %v318
      %v320 = vrot.slane %v315, %v319
      %v321 = vmul.f32 %v301, %v320
      %v322 = vmul.f32 %v304, %v320
      %v323 = vmul.f32 %v309, %v320
      %v324 = vmul.f32 %v312, %v320
      %v325 = vlaneseq
      %v326 = vshrl.u32 %v325, 7
      %v327 = vsub.s32 0, %v326
      %v328 = vrot.slane %v316, %v327
      %v329 = vadd.f32 %v321, %v328
      %v330 = vadd.f32 %v322, %v328
      %v331 = vadd.f32 %v323, %v328
      %v332 = vadd.f32 %v324, %v328
      %v333 = vmax.f32 %v329, 0.0
      %v334 = vmax.f32 %v330, 0.0
      %v335 = vmax.f32 %v331, 0.0
      %v336 = vmax.f32 %v332, 0.0
      %337 = vst [vmem:[%s226] sm:$0xff] %v333
      %338 = vst [vmem:[%s226 + $0x8] sm:$0xff] %v334
      %339 = vst [vmem:[%s226 + $0x10] sm:$0xff] %v335
      %340 = vst [vmem:[%s226 + $0x18] sm:$0xff] %v336
      %s341 = smul.u32 4, %s18
      %p342 = scmp.lt.s32.totalorder %s341, 7
      %s343 = scalar_select %p342, %s341, 7
      %p344 = scmp.lt.s32.totalorder %s19, 0
      %s345 = scalar_select %p344, %s19, 0
      %s346 = sadd.s32 %s345, %s343
      %s347 = smul.addr %s346, 8
      %s348 = scalar_lea.vmem %s3, %s347
      // Predicated region
      $region33: #{base_linear_layer_forward.1} parent=31 // pred_check
        %p349 = pneg %p124
      $region34: #{base_linear_layer_forward.1} parent=31 // pred_check_branch
        %351 = sbr.rel (%p349) target = $region36
      $region35: #{base_linear_layer_forward.1} parent=31 // pred_region
        %s352 = smul.u32 4, %s18
      $region36: #{base_linear_layer_forward.1} parent=31 // pred_fallthru
        _
    $region32: #{base_linear_layer_forward.1} parent=5 // pred_fallthru
      _
    %p353 = scmp.le.s32.totalorder 2, %s9
    // Predicated region
    $region37: #{base_linear_layer_forward.1} parent=5 // pred_check
      %p354 = pneg %p353
    $region38: #{base_linear_layer_forward.1} parent=5 // pred_check_branch
      %356 = sbr.rel (%p354) target = $region40
    $region39: #{base_linear_layer_forward.1} parent=5 // pred_region
      %s357 = ssub.s32 %s9, 2
      // Predicated region
      $region41: #{base_linear_layer_forward.1} parent=39 // pred_check
        %p358 = pneg %p130
      $region42: #{base_linear_layer_forward.1} parent=39 // pred_check_branch
        %360 = sbr.rel (%p358) target = $region44
      $region43: #{base_linear_layer_forward.1} parent=39 // pred_region
        %s361 = smul.u32 4, %s20
        %p362 = scmp.lt.s32.totalorder %s361, 7
        %s363 = scalar_select %p362, %s361, 7
        %p364 = scmp.lt.s32.totalorder %s21, 0
        %s365 = scalar_select %p364, %s21, 0
        %s366 = sadd.s32 %s365, %s363
        %s367 = smul.addr %s366, 8
        %s368 = scalar_lea.vmem %s3, %s367
      $region44: #{base_linear_layer_forward.1} parent=39 // pred_fallthru
        _
    $region40: #{base_linear_layer_forward.1} parent=5 // pred_fallthru
      _
  $region6: #{base_linear_layer_forward.1} parent=0 // loop_footer
    %s13 = sadd.s32 1, %s9
  $region7: #{base_linear_layer_forward.1} parent=0 // loop_footer_branch
    %8 = sbr.rel target = $region3
  $region8: #{base_linear_layer_forward.1} parent=0 // loop_exit
    _

</llo_original>
